<compile_context>
chip_gen: v7x
topology: tpu7x:2x2x1
jax: 0.10.0
libtpu: 0.0.40
codegen_flags: <defaults>
</compile_context>

<pallas_src>
import jax
import jax.numpy as jnp
from jax.experimental import pallas as pl
from jax.experimental.pallas import tpu as pltpu


def qnet_kernel(xt_ref, w1t_ref, b1_ref, w2_ref, b2_ref, o_ref):
    """Fused fc1 -> ReLU -> fc2 on one (F, tm) batch tile.

    xt  : (F, tm)  input, batch on the lane axis
    w1t : (H, F)   fc1 weight transposed (column k = weights for feature k)
    b1  : (H, 1)   fc1 bias column
    w2  : (H, 1)   fc2 weight column
    b2  : (1,)     fc2 bias scalar (SMEM)
    o   : (1, tm)  lane-dense output row
    """
    xt = xt_ref[...].astype(jnp.float32)
    w1t = w1t_ref[...].astype(jnp.float32)
    b1 = b1_ref[...].astype(jnp.float32)
    w2 = w2_ref[...].astype(jnp.float32)

    n_features = xt.shape[0]

    # ---- Layer 1 (VPU): F unrolled outer-product FMAs -> lane-dense (H, tm).
    # (H,1) * (1,tm) broadcasts to (H,tm); F is tiny (4 for CartPole), so this
    # is a handful of VALU bundles and the accumulator is lane-dense
    # (ceil(H/8) * tm/128 vregs), so no register spills at tm=1024.
    acc = w1t[:, 0:1] * xt[0:1, :]
    for k in range(1, n_features):
        acc = acc + w1t[:, k : k + 1] * xt[k : k + 1, :]
    h = jnp.maximum(acc + b1, 0.0)  # bias + ReLU, still (H, tm)

    # ---- Layer 2: lane-dense multiply, then reduce H across the sublane axis
    # (XLU slot -- idle in this memory-bound kernel), bias fused into store.
    out = jnp.sum(h * w2, axis=0, keepdims=True) + b2_ref[0]  # (1, tm)
    o_ref[...] = out.astype(o_ref.dtype)


def _cost_estimate(batch, n_features, hidden):
    # fc1: 2*B*F*H, relu: B*H, fc2: 2*B*H  ->  ~2*B*H*(F+1); memory is
    # dominated by reading x (4*F bytes/row) and writing out (4 bytes/row).
    return pl.CostEstimate(
        flops=2 * batch * hidden * (n_features + 1),
        transcendentals=0,
        bytes_accessed=4 * (batch * (n_features + 1) + hidden * (n_features + 2) + 1),
    )


def qnet_forward_t(xt, w1, b1, w2, b2, *, block_batch=1024, fused_max=256):
    """relu(x @ w1 + b1) @ w2 + b2, with x pre-transposed: xt = x.T of shape (F, B).

    Returns a (B, 1) array of dtype xt.dtype.
    xt : (F, B), w1 : (F, H), b1 : (H,), w2 : (H, 1), b2 : (1,)
    """
    F, B = xt.shape
    H = w1.shape[1]

    w1t = w1.T                      # (H, F): column k = fc1 weights of feature k
    b1c = b1.reshape(H, 1)
    w2c = w2.reshape(H, 1)
    b2s = b2.reshape(1)             # scalar, lives in SMEM

    smem_spec = pl.BlockSpec(memory_space=pltpu.MemorySpace.SMEM)
    cost = _cost_estimate(B, F, H)

    if B <= fused_max:
        # Per-step inference: one fused grid=() invocation, one VMEM tile each.
        full = lambda shape: pl.BlockSpec(shape, lambda: (0,) * len(shape))
        out = pl.pallas_call(
            qnet_kernel,
            out_shape=jax.ShapeDtypeStruct((1, B), xt.dtype),
            grid=(),
            in_specs=[full((F, B)), full((H, F)), full((H, 1)), full((H, 1)), smem_spec],
            out_specs=full((1, B)),
            cost_estimate=cost,
        )(xt, w1t, b1c, w2c, b2s)
        return out.reshape(B, 1)    # (1,B) -> (B,1): same linear order, metadata-only

    # Rollout-sized batches: tile the lane (batch) axis.  Keep >= 2 grid steps
    # so v7x's two TensorCores both get work ("parallel" axis), and cap the
    # tile at block_batch so the (H, tm) accumulator stays well inside the
    # 64-vreg file.  Lane-dense tiles are tiny, so VMEM is never the limit.
    half = pl.cdiv(B, 2)
    tm = max(128, min(block_batch, pl.cdiv(half, 128) * 128))
    grid = (pl.cdiv(B, tm),)
    out = pl.pallas_call(
        qnet_kernel,
        out_shape=jax.ShapeDtypeStruct((1, B), xt.dtype),
        grid=grid,
        in_specs=[
            # TODO(synk): add pipeline_mode=pl.Buffered(3) here if a profile
            # ever shows exposed DMA issue latency on the x stream.
            pl.BlockSpec((F, tm), lambda i: (0, i)),
            pl.BlockSpec((H, F), lambda i: (0, 0)),   # weights stay resident
            pl.BlockSpec((H, 1), lambda i: (0, 0)),
            pl.BlockSpec((H, 1), lambda i: (0, 0)),
            smem_spec,
        ],
        out_specs=pl.BlockSpec((1, tm), lambda i: (0, i)),
        compiler_params=pltpu.CompilerParams(dimension_semantics=("parallel",)),
        cost_estimate=cost,
    )(xt, w1t, b1c, w2c, b2s)
    return out.reshape(B, 1)


def qnet_forward(x, w1, b1, w2, b2, **kw):
    """Convenience wrapper taking x in torch layout (B, F)."""
    # The transpose to (F, B) is a small extra XLA read+write of x (16 B/row);
    # in a real actor-critic loop, store rollout observations pre-transposed
    # and call qnet_forward_t directly to skip it.
    # TODO(synk): deinterleave the (B, 4) rows in-kernel (wrapper reshape to
    # (B//32, 128) + strided lane slices) to drop this transpose entirely.
    return qnet_forward_t(jnp.transpose(x), w1, b1, w2, b2, **kw)


def init_params(key, n_features, hidden=20):
    # Mirrors QNet.init_weights(): normal(0, 0.1) weights, constant 0.01 biases.
    k1, k2 = jax.random.split(key)
    w1 = jax.random.normal(k1, (n_features, hidden), jnp.float32) * 0.1
    b1 = jnp.full((hidden,), 0.01, jnp.float32)
    w2 = jax.random.normal(k2, (hidden, 1), jnp.float32) * 0.1
    b2 = jnp.full((1,), 0.01, jnp.float32)
    return w1, b1, w2, b2


def reference(x, w1, b1, w2, b2):
    return jnp.maximum(x @ w1 + b1, 0.0) @ w2 + b2


if __name__ == "__main__":
    key = jax.random.PRNGKey(0)
    kx, kxm, kxl, kp = jax.random.split(key, 4)

    n_features = 4  # CartPole observation size
    w1, b1, w2, b2 = init_params(kp, n_features)

    # --- Small batch: single fused grid=() call (typical per-step inference) --
    x = jax.random.normal(kx, (8, n_features), jnp.float32)
    out = jax.block_until_ready(qnet_forward(x, w1, b1, w2, b2))
    ref = reference(x, w1, b1, w2, b2)
    assert out.shape == (8, 1)
    assert jnp.allclose(out, ref, atol=1e-5, rtol=1e-5), "small-batch mismatch"

    # --- Ragged rollout batch: grid path with a partial (masked) tail tile ----
    xm = jax.random.normal(kxm, (1000, n_features), jnp.float32)
    out_m = jax.block_until_ready(qnet_forward(xm, w1, b1, w2, b2))
    ref_m = reference(xm, w1, b1, w2, b2)
    assert out_m.shape == (1000, 1)
    assert jnp.allclose(out_m, ref_m, atol=1e-5, rtol=1e-5), "ragged-batch mismatch"

    # --- Large batch, pre-transposed input (no wrapper transpose needed) ------
    xl_t = jax.random.normal(kxl, (n_features, 2048), jnp.float32)
    out_l = jax.block_until_ready(qnet_forward_t(xl_t, w1, b1, w2, b2))
    ref_l = reference(xl_t.T, w1, b1, w2, b2)
    assert out_l.shape == (2048, 1)
    assert jnp.allclose(out_l, ref_l, atol=1e-5, rtol=1e-5), "large-batch mismatch"

    print("KERNEL_OK")
</pallas_src>

<mosaic_0001>
module attributes {stable_mosaic.version = 11 : i64} {
  func.func @qnet_kernel(%arg0: memref<4x8xf32, #tpu.memory_space<vmem>>, %arg1: memref<20x4xf32, #tpu.memory_space<vmem>>, %arg2: memref<20x1xf32, #tpu.memory_space<vmem>>, %arg3: memref<20x1xf32, #tpu.memory_space<vmem>>, %arg4: memref<1xf32, #tpu.memory_space<smem>>, %arg5: memref<1x8xf32, #tpu.memory_space<vmem>>) attributes {dimension_semantics = [], scalar_prefetch = 0 : i64, scratch_operands = 0 : i64, tpu.core_type = #tpu.core_type<tc>} {
    %c0 = arith.constant 0 : index
    %c0_0 = arith.constant 0 : index
    %0 = vector.load %arg0[%c0, %c0_0] : memref<4x8xf32, #tpu.memory_space<vmem>>, vector<4x8xf32>
    %c0_1 = arith.constant 0 : index
    %c0_2 = arith.constant 0 : index
    %1 = vector.load %arg1[%c0_1, %c0_2] : memref<20x4xf32, #tpu.memory_space<vmem>>, vector<20x4xf32>
    %c0_3 = arith.constant 0 : index
    %c0_4 = arith.constant 0 : index
    %2 = vector.load %arg2[%c0_3, %c0_4] : memref<20x1xf32, #tpu.memory_space<vmem>>, vector<20x1xf32>
    %c0_5 = arith.constant 0 : index
    %c0_6 = arith.constant 0 : index
    %3 = vector.load %arg3[%c0_5, %c0_6] : memref<20x1xf32, #tpu.memory_space<vmem>>, vector<20x1xf32>
    %4 = vector.extract_strided_slice %1 {offsets = [0, 0], sizes = [20, 1], strides = [1, 1]} : vector<20x4xf32> to vector<20x1xf32>
    %5 = vector.extract_strided_slice %0 {offsets = [0, 0], sizes = [1, 8], strides = [1, 1]} : vector<4x8xf32> to vector<1x8xf32>
    %6 = vector.broadcast %4 : vector<20x1xf32> to vector<20x8xf32>
    %7 = vector.broadcast %5 : vector<1x8xf32> to vector<20x8xf32>
    %8 = arith.mulf %6, %7 : vector<20x8xf32>
    %9 = vector.extract_strided_slice %1 {offsets = [0, 1], sizes = [20, 1], strides = [1, 1]} : vector<20x4xf32> to vector<20x1xf32>
    %10 = vector.extract_strided_slice %0 {offsets = [1, 0], sizes = [1, 8], strides = [1, 1]} : vector<4x8xf32> to vector<1x8xf32>
    %11 = vector.broadcast %9 : vector<20x1xf32> to vector<20x8xf32>
    %12 = vector.broadcast %10 : vector<1x8xf32> to vector<20x8xf32>
    %13 = arith.mulf %11, %12 : vector<20x8xf32>
    %14 = arith.addf %8, %13 : vector<20x8xf32>
    %15 = vector.extract_strided_slice %1 {offsets = [0, 2], sizes = [20, 1], strides = [1, 1]} : vector<20x4xf32> to vector<20x1xf32>
    %16 = vector.extract_strided_slice %0 {offsets = [2, 0], sizes = [1, 8], strides = [1, 1]} : vector<4x8xf32> to vector<1x8xf32>
    %17 = vector.broadcast %15 : vector<20x1xf32> to vector<20x8xf32>
    %18 = vector.broadcast %16 : vector<1x8xf32> to vector<20x8xf32>
    %19 = arith.mulf %17, %18 : vector<20x8xf32>
    %20 = arith.addf %14, %19 : vector<20x8xf32>
    %21 = vector.extract_strided_slice %1 {offsets = [0, 3], sizes = [20, 1], strides = [1, 1]} : vector<20x4xf32> to vector<20x1xf32>
    %22 = vector.extract_strided_slice %0 {offsets = [3, 0], sizes = [1, 8], strides = [1, 1]} : vector<4x8xf32> to vector<1x8xf32>
    %23 = vector.broadcast %21 : vector<20x1xf32> to vector<20x8xf32>
    %24 = vector.broadcast %22 : vector<1x8xf32> to vector<20x8xf32>
    %25 = arith.mulf %23, %24 : vector<20x8xf32>
    %26 = arith.addf %20, %25 : vector<20x8xf32>
    %27 = vector.broadcast %2 : vector<20x1xf32> to vector<20x8xf32>
    %28 = arith.addf %26, %27 : vector<20x8xf32>
    %cst = arith.constant 0.000000e+00 : f32
    %29 = vector.broadcast %cst : f32 to vector<20x8xf32>
    %30 = arith.maximumf %28, %29 : vector<20x8xf32>
    %31 = vector.broadcast %3 : vector<20x1xf32> to vector<20x8xf32>
    %32 = arith.mulf %30, %31 : vector<20x8xf32>
    %cst_7 = arith.constant dense<0.000000e+00> : vector<8xf32>
    %33 = vector.multi_reduction <add>, %32, %cst_7 [0] : vector<20x8xf32> to vector<8xf32>
    %34 = vector.shape_cast %33 : vector<8xf32> to vector<1x8xf32>
    %c0_8 = arith.constant 0 : index
    %35 = memref.load %arg4[%c0_8] : memref<1xf32, #tpu.memory_space<smem>>
    %36 = vector.broadcast %35 : f32 to vector<1x8xf32>
    %37 = arith.addf %34, %36 : vector<1x8xf32>
    %c0_9 = arith.constant 0 : index
    %c0_10 = arith.constant 0 : index
    %38 = vector.load %arg5[%c0_9, %c0_10] : memref<1x8xf32, #tpu.memory_space<vmem>>, vector<1x8xf32>
    tpu.vector_store %arg5[%c0_9, %c0_10], %37 {strides = array<i32>} : memref<1x8xf32, #tpu.memory_space<vmem>>, vector<1x8xf32>,
    return
  }
}

</mosaic_0001>

<llo_original>
// kernel: tpu_custom_call.1
$region0: #{tpu_custom_call.1}
  #allocation0 [shape = 'u32[]', space=smem, size = 0x4, offset = 0x4, fixed_abs, tag = 'smem constant byte address 0x4 - core index']
  #allocation1 [shape = 'u32[144,128]{1,0:T(1,128)}', space=vmem, size = 0x12000, scoped, tag = 'internal scratch']
  #allocation2 [shape = 'f32[1]{0:T(128)S(6)}', space=smem, size = 0x200, scoped, tag = 'scoped memory for tpu_custom_call.1']
  %s0 = inlined_call_operand.vmem [shape: f32[4,8], index: 0, kind: input, shape index: {}]
  %s1 = inlined_call_operand.vmem [shape: f32[20,4], index: 1, kind: input, shape index: {}]
  %s2 = inlined_call_operand.vmem [shape: f32[20,1], index: 2, kind: input, shape index: {}]
  %s3 = inlined_call_operand.vmem [shape: f32[20,1], index: 3, kind: input, shape index: {}]
  %s4 = inlined_call_operand.<no memory space> [shape: f32[1], index: 4, kind: input, shape index: {}]
  %s5 = inlined_call_operand.hbm [shape: f32[1,8], index: 5, kind: output, shape index: {}]
  %s6 = sld [smem:[#allocation0]]
  $region30: #{tpu_custom_call.1} parent=0
    _
  %s8 = ssub.s32 1, %s6
  %s9 = scalar_select 0, %s8, %s6
  %10 = sst [smem:[#allocation2]] %s4
  $region1: #{tpu_custom_call.1} parent=0
    #allocation3 [shape = 'u8[512]{0}', space=vmem, size = 0x400, scoped, tag = 'output window, operand 0, single buffered']
    #allocation4 [shape = 's32[1]{0}', space=sflag, size = 0x4, scoped, tag = 'scoped memory for tpu_custom_call.1']
    %11 = vsyncpa [#allocation4], 0
    // Predicated region
    $region2: #{tpu_custom_call.1} parent=1 // pred_check
      _
    $region3: #{tpu_custom_call.1} parent=1 // pred_check_branch
      %13 = sbr.rel (0) target = $region5
    $region4: #{tpu_custom_call.1} parent=1 // pred_region
      _
    $region5: #{tpu_custom_call.1} parent=1 // pred_fallthru
      _
    // Predicated region
    $region6: #{tpu_custom_call.1} parent=1 // pred_check
      _
    $region7: #{tpu_custom_call.1} parent=1 // pred_check_branch
      %15 = sbr.rel (0) target = $region9
    $region8: #{tpu_custom_call.1} parent=1 // pred_region
      _
    $region9: #{tpu_custom_call.1} parent=1 // pred_fallthru
      _
    // Predicated region
    $region10: #{tpu_custom_call.1} parent=1 // pred_check
      _
    $region11: #{tpu_custom_call.1} parent=1 // pred_check_branch
      %17 = sbr.rel (0) target = $region13
    $region12: #{tpu_custom_call.1} parent=1 // pred_region
      _
    $region13: #{tpu_custom_call.1} parent=1 // pred_fallthru
      _
    // Predicated region
    $region14: #{tpu_custom_call.1} parent=1 // pred_check
      _
    $region15: #{tpu_custom_call.1} parent=1 // pred_check_branch
      %19 = sbr.rel (0) target = $region17
    $region16: #{tpu_custom_call.1} parent=1 // pred_region
      _
    $region17: #{tpu_custom_call.1} parent=1 // pred_fallthru
      _
    // Predicated region
    $region18: #{tpu_custom_call.1} parent=1 // pred_check
      _
    $region19: #{tpu_custom_call.1} parent=1 // pred_check_branch
      %21 = sbr.rel (0) target = $region21
    $region20: #{tpu_custom_call.1} parent=1 // pred_region
      _
    $region21: #{tpu_custom_call.1} parent=1 // pred_fallthru
      _
    %v22 = vld [vmem:[%s0] sm:$0xf]
    %v23 = vld [vmem:[%s1] sm:$0xff]
    %v24 = vld [vmem:[%s1 + $0x8] sm:$0xff]
    %v25 = vld [vmem:[%s1 + $0x10] sm:$0xf]
    %v26 = vld [vmem:[%s2] sm:$0xff]
    %v27 = vld [vmem:[%s2 + $0x8] sm:$0xff]
    %v28 = vld [vmem:[%s2 + $0x10] sm:$0xf]
    %v29 = vld [vmem:[%s3] sm:$0xff]
    %v30 = vld [vmem:[%s3 + $0x8] sm:$0xff]
    %v31 = vld [vmem:[%s3 + $0x10] sm:$0xf]
    %33 = vset.pattern.permute.xlu0 0
    %34 = vperm.xlu0 %33, %v23
    %v35 = vpop.permute.xlu0 %34
    %38 = vset.pattern.permute.xlu0 0
    %39 = vperm.xlu0 %38, %v24
    %v40 = vpop.permute.xlu0 %39
    %43 = vset.pattern.permute.xlu0 0
    %44 = vperm.xlu0 %43, %v25
    %v45 = vpop.permute.xlu0 %44
    %v47 = vlaneseq
    %v48 = vshrl.u32 %v47, 7
    %v49 = vsub.s32 0, %v48
    %v50 = vrot.slane %v22, %v49
    %v51 = vmul.f32 %v35, %v50
    %v52 = vmul.f32 %v40, %v50
    %v53 = vmul.f32 %v45, %v50
    %54 = vset.pattern.permute.xlu0 1
    %55 = vperm.xlu0 %54, %v23
    %v56 = vpop.permute.xlu0 %55
    %58 = vset.pattern.permute.xlu0 1
    %59 = vperm.xlu0 %58, %v24
    %v60 = vpop.permute.xlu0 %59
    %62 = vset.pattern.permute.xlu0 1
    %63 = vperm.xlu0 %62, %v25
    %v64 = vpop.permute.xlu0 %63
    %v66 = vlaneseq
    %v67 = vshrl.u32 %v66, 7
    %v68 = vsub.s32 1, %v67
    %v69 = vrot.slane %v22, %v68
    %v70 = vmul.f32 %v56, %v69
    %v71 = vmul.f32 %v60, %v69
    %v72 = vmul.f32 %v64, %v69
    %v73 = vadd.f32 %v51, %v70
    %v74 = vadd.f32 %v52, %v71
    %v75 = vadd.f32 %v53, %v72
    %76 = vset.pattern.permute.xlu0 2
    %77 = vperm.xlu0 %76, %v23
    %v78 = vpop.permute.xlu0 %77
    %80 = vset.pattern.permute.xlu0 2
    %81 = vperm.xlu0 %80, %v24
    %v82 = vpop.permute.xlu0 %81
    %84 = vset.pattern.permute.xlu0 2
    %85 = vperm.xlu0 %84, %v25
    %v86 = vpop.permute.xlu0 %85
    %v88 = vlaneseq
    %v89 = vshrl.u32 %v88, 7
    %v90 = vsub.s32 2, %v89
    %v91 = vrot.slane %v22, %v90
    %v92 = vmul.f32 %v78, %v91
    %v93 = vmul.f32 %v82, %v91
    %v94 = vmul.f32 %v86, %v91
    %v95 = vadd.f32 %v73, %v92
    %v96 = vadd.f32 %v74, %v93
    %v97 = vadd.f32 %v75, %v94
    %98 = vset.pattern.permute.xlu0 3
    %99 = vperm.xlu0 %98, %v23
    %v100 = vpop.permute.xlu0 %99
    %102 = vset.pattern.permute.xlu0 3
    %103 = vperm.xlu0 %102, %v24
    %v104 = vpop.permute.xlu0 %103
    %106 = vset.pattern.permute.xlu0 3
    %107 = vperm.xlu0 %106, %v25
    %v108 = vpop.permute.xlu0 %107
    %v110 = vlaneseq
    %v111 = vshrl.u32 %v110, 7
    %v112 = vsub.s32 3, %v111
    %v113 = vrot.slane %v22, %v112
    %v114 = vmul.f32 %v100, %v113
    %v115 = vmul.f32 %v104, %v113
    %v116 = vmul.f32 %v108, %v113
    %v117 = vadd.f32 %v95, %v114
    %v118 = vadd.f32 %v96, %v115
    %v119 = vadd.f32 %v97, %v116
    %121 = vset.pattern.permute.xlu0 0
    %122 = vperm.xlu0 %121, %v26
    %v123 = vpop.permute.xlu0 %122
    %126 = vset.pattern.permute.xlu0 0
    %127 = vperm.xlu0 %126, %v27
    %v128 = vpop.permute.xlu0 %127
    %131 = vset.pattern.permute.xlu0 0
    %132 = vperm.xlu0 %131, %v28
    %v133 = vpop.permute.xlu0 %132
    %v135 = vadd.f32 %v117, %v123
    %v136 = vadd.f32 %v118, %v128
    %v137 = vadd.f32 %v119, %v133
    %v138 = vmax.f32 %v135, 0.0
    %v139 = vmax.f32 %v136, 0.0
    %v140 = vmax.f32 %v137, 0.0
    %142 = vset.pattern.permute.xlu0 0
    %143 = vperm.xlu0 %142, %v29
    %v144 = vpop.permute.xlu0 %143
    %147 = vset.pattern.permute.xlu0 0
    %148 = vperm.xlu0 %147, %v30
    %v149 = vpop.permute.xlu0 %148
    %152 = vset.pattern.permute.xlu0 0
    %153 = vperm.xlu0 %152, %v31
    %v154 = vpop.permute.xlu0 %153
    %v156 = vmul.f32 %v138, %v144
    %v157 = vmul.f32 %v139, %v149
    %v158 = vmul.f32 %v140, %v154
    %vm159 = vcmask 64512
    %v160 = vsel %vm159, %v156, 0.0
    %v161 = vsel %vm159, %v157, 0.0
    %v162 = vadd.f32 %v160, %v161
    %vm163 = vcmask 60416
    %v164 = vsel %vm163, %v158, 0.0
    %v165 = vadd.f32 %v162, %v164
    %v166 = vrot.slane %v165, 4
    %v167 = vadd.f32 %v165, %v166
    %v168 = vrot.slane %v167, 2
    %v169 = vadd.f32 %v167, %v168
    %v170 = vrot.slane %v169, 1
    %v171 = vadd.f32 %v169, %v170
    %s172 = sld [smem:[#allocation2]]
    %v173 = vstv %s172
    %v174 = vadd.f32 %v171, %v173
    %vm175 = vcmask 57344
    %176 = vst.msk [vmem:[#allocation3] sm:$0x1] %vm175, %v174
    // Predicated region
    $region22: #{tpu_custom_call.1} parent=1 // pred_check
      _
    $region23: #{tpu_custom_call.1} parent=1 // pred_check_branch
      %178 = sbr.rel (0) target = $region25
    $region24: #{tpu_custom_call.1} parent=1 // pred_region
      %s180 = ssub.s32 16, 16
      %181 = vsyncadd [#allocation4], %s180
      %s183 = sshll.u32 [#allocation3], 4
      %s184 = int_to_ptr.vmem [resolvable:$true] %s183
      %186 = dma.vmem_to_hbm [thread:$0]  %s184, 16, %s5, [#allocation4]
    $region25: #{tpu_custom_call.1} parent=1 // pred_fallthru
      _
    // Predicated region
    $region26: #{tpu_custom_call.1} parent=1 // pred_check
      _
    $region27: #{tpu_custom_call.1} parent=1 // pred_check_branch
      %188 = sbr.rel (0) target = $region29
    $region28: #{tpu_custom_call.1} parent=1 // pred_region
      %189 = dma.done [#allocation4], 16
    $region29: #{tpu_custom_call.1} parent=1 // pred_fallthru
      _
    %190 = vsyncpa [#allocation4], 1

</llo_original>
